<compile_context>
chip_gen: v6e
topology: v6e:2x2x1
jax: 0.10.0
libtpu: 0.0.40
codegen_flags: <defaults>
</compile_context>

<pallas_src>
import functools

import numpy as np
import jax
import jax.numpy as jnp
from jax.experimental import pallas as pl
from jax.experimental.pallas import tpu as pltpu


_COPY_MAX_SLICES = 64            # max unrolled slice-copies for the data-movement path
_VMEM_BUDGET = 24 * 1024 * 1024  # tile + temp budget (fits every TPU generation)
_VMEM_LIMIT = 32 * 1024 * 1024   # explicit scoped-VMEM limit


def _round_up(x, m):
    return ((x + m - 1) // m) * m


def _pick_tr(r, per_row_bytes, fixed_bytes):
    """Largest sublane-aligned row tile fitting the VMEM budget, with >=4 grid steps."""
    avail = max(_VMEM_BUDGET - fixed_bytes, 0)
    tr = avail // max(per_row_bytes, 1)
    tr = min(tr, 512)                              # diminishing returns past ~512 rows
    tr = min(tr, _round_up(pl.cdiv(r, 4), 8))      # >=4 parallel steps (2 TCs on v7x)
    tr = max(8, (tr // 8) * 8)                     # sublane (8) aligned
    return min(tr, r)


# ---------------------------------------------------------------------------
# Kernel 1: pure data movement (small permutation span).
#   x_ref: (TR, bh*W)  ->  o_ref: (TR, Wo*K)   -- same lanes, permuted.
# One full-width vector load, then bh*Wo static contiguous lane-slice stores
# (no MXU, dtype agnostic, bit-exact).
# ---------------------------------------------------------------------------
def _s2d_copy_kernel(x_ref, o_ref, *, bh, bw, W):
    Wo = W // bw
    K = bh * bw
    x = x_ref[...]                                 # single full-tile load
    for bi in range(bh):
        for j in range(Wo):
            src = bi * W + j * bw
            dst = j * K + bi * bw
            o_ref[:, dst:dst + bw] = x[:, src:src + bw]


# ---------------------------------------------------------------------------
# Kernel 2: one-hot permutation matmul (large permutation span, float input).
#   perm_ref: (1, L) int32 -- source lane for every output lane.
# The one-hot matrix is built in-registers each step (iota equality), so no
# (L, L) constant is streamed from HBM or double-buffered in VMEM.
# ---------------------------------------------------------------------------
def _s2d_matmul_kernel(perm_ref, x_ref, o_ref, *, compute_dtype, precision):
    lin = x_ref.shape[-1]
    lout = o_ref.shape[-1]
    src_lane = jax.lax.broadcasted_iota(jnp.int32, (lin, lout), 0)
    onehot = (src_lane == perm_ref[...]).astype(compute_dtype)      # (L, L)
    o_ref[...] = jnp.dot(
        x_ref[...].astype(compute_dtype),
        onehot,
        preferred_element_type=jnp.float32,
        precision=precision,
    ).astype(o_ref.dtype)


def space_to_depth(x, block_size):
    """Pallas TPU forward of SpaceToDepth: NCHW -> (N, C, H/bh, W/bw, bh*bw)."""
    bh, bw = block_size
    N, C, H, W = x.shape
    if H % bh or W % bw:
        raise ValueError("H and W must be divisible by block_size")
    Ho, Wo, K = H // bh, W // bw, bh * bw
    R = N * C * Ho
    L = bh * W                        # permuted lane span (== Wo * K)

    use_copy = (bh * Wo) <= _COPY_MAX_SLICES
    is_float = jnp.issubdtype(x.dtype, jnp.floating)

    if not use_copy and not is_float:
        # TODO(synk): large-span integer inputs need an exact strided/gather
        # data-movement kernel (the MXU one-hot path is float-only); fall back
        # to XLA's native transpose, which is exact for any dtype.
        xr = x.reshape(N, C, Ho, bh, Wo, bw)
        xr = jnp.transpose(xr, (0, 1, 2, 4, 3, 5))
        return xr.reshape(N, C, Ho, Wo, K)

    x2 = x.reshape(R, L)              # free, row-major reshape
    esize = x.dtype.itemsize

    if use_copy:
        per_row = 2 * 2 * L * esize                         # double-buffered in + out
        tr = _pick_tr(R, per_row, 0)
        kernel = functools.partial(_s2d_copy_kernel, bh=bh, bw=bw, W=W)
        in_specs = [pl.BlockSpec((tr, L), lambda r: (r, 0))]
        operands = (x2,)
    else:
        if x.dtype == jnp.bfloat16:
            # single default-precision MXU pass; exact for a 0/1 matrix
            compute_dtype, precision = jnp.bfloat16, None
        else:
            # f32 (or f16 upcast): HIGHEST keeps the one-hot matmul exact
            # (every output lane is one full-precision product plus zeros)
            compute_dtype, precision = jnp.float32, jax.lax.Precision.HIGHEST
        cesize = jnp.dtype(compute_dtype).itemsize
        fixed = L * L * cesize                              # in-kernel one-hot (single copy)
        if fixed > _VMEM_BUDGET:
            raise NotImplementedError(
                "permutation span bh*W too large for the one-hot VMEM budget; "
                "TODO(synk): needs a strided/gather data-movement kernel")
        per_row = 2 * 2 * L * esize + L * cesize + L * 4    # pipelined io + compute temps
        tr = _pick_tr(R, per_row, fixed)

        # source lane for each output lane:  out (j, bi, bj)  <-  in (bi, j, bj)
        dst = np.arange(L, dtype=np.int64)
        j, k = dst // K, dst % K
        perm = ((k // bw) * W + j * bw + (k % bw)).astype(np.int32).reshape(1, L)
        perm = jnp.asarray(perm)

        kernel = functools.partial(
            _s2d_matmul_kernel, compute_dtype=compute_dtype, precision=precision)
        in_specs = [
            pl.BlockSpec((1, L), lambda r: (0, 0)),         # tiny; same block every step
            pl.BlockSpec((tr, L), lambda r: (r, 0)),
        ]
        operands = (perm, x2)

    out2 = pl.pallas_call(
        kernel,
        out_shape=jax.ShapeDtypeStruct((R, L), x.dtype),
        grid=(pl.cdiv(R, tr),),
        in_specs=in_specs,
        out_specs=pl.BlockSpec((tr, L), lambda r: (r, 0)),
        compiler_params=pltpu.CompilerParams(
            dimension_semantics=("parallel",),
            vmem_limit_bytes=_VMEM_LIMIT,
        ),
    )(*operands)

    return out2.reshape(N, C, Ho, Wo, K)


def _reference(x, block_size):
    """Pure-JAX mirror of the PyTorch forward."""
    bh, bw = block_size
    N, C, H, W = x.shape
    xr = x.reshape(N, C, H // bh, bh, W // bw, bw)
    xr = jnp.transpose(xr, (0, 1, 2, 4, 3, 5))
    return xr.reshape(N, C, H // bh, W // bw, bh * bw)


if __name__ == "__main__":
    key = jax.random.PRNGKey(0)
    k1, k2, k3 = jax.random.split(key, 3)
    block_size = (2, 2)

    # 1) Module-sized demo (small span -> pure data-movement kernel path), f32.
    x = jax.random.normal(k1, (2, 4, 16, 16), dtype=jnp.float32)
    out = jax.block_until_ready(space_to_depth(x, block_size))
    ref = _reference(x, block_size)
    assert out.shape == ref.shape and out.dtype == ref.dtype, (out.shape, out.dtype)
    assert bool(jnp.array_equal(out, ref)), "copy-path (f32) mismatch"

    # 2) Integer input with a ragged row grid (copy path is dtype agnostic).
    xi = jax.random.randint(k2, (1, 3, 10, 16), 0, 100, dtype=jnp.int32)
    outi = jax.block_until_ready(space_to_depth(xi, block_size))
    assert bool(jnp.array_equal(outi, _reference(xi, block_size))), "copy-path (int32) mismatch"

    # 3) Wider image in bf16 -> in-kernel one-hot MXU path (exact for 0/1 matrix).
    xb = jax.random.normal(k3, (1, 2, 8, 128), dtype=jnp.bfloat16)
    outb = jax.block_until_ready(space_to_depth(xb, block_size))
    assert bool(jnp.array_equal(outb, _reference(xb, block_size))), "matmul-path (bf16) mismatch"

    print("KERNEL_OK")
</pallas_src>

<mosaic_0001>
module attributes {stable_mosaic.version = 11 : i64} {
  func.func @_s2d_copy_kernel(%arg0: i32, %arg1: memref<16x32xf32, #tpu.memory_space<vmem>>, %arg2: memref<16x32xf32, #tpu.memory_space<vmem>>) attributes {dimension_semantics = [#tpu.dimension_semantics<parallel>], iteration_bounds = array<i64: 4>, scalar_prefetch = 0 : i64, scratch_operands = 0 : i64, tpu.core_type = #tpu.core_type<tc>, window_params = [{transform_indices = @transform_0, window_bounds = array<i64: 16, 32>}, {transform_indices = @transform_1, window_bounds = array<i64: 16, 32>}]} {
    %c0 = arith.constant 0 : index
    %c0_0 = arith.constant 0 : index
    %0 = vector.load %arg1[%c0, %c0_0] : memref<16x32xf32, #tpu.memory_space<vmem>>, vector<16x32xf32>
    %1 = vector.extract_strided_slice %0 {offsets = [0, 0], sizes = [16, 2], strides = [1, 1]} : vector<16x32xf32> to vector<16x2xf32>
    %c0_1 = arith.constant 0 : index
    %c0_2 = arith.constant 0 : index
    %2 = vector.load %arg2[%c0_1, %c0_2] : memref<16x32xf32, #tpu.memory_space<vmem>>, vector<16x2xf32>
    tpu.vector_store %arg2[%c0_1, %c0_2], %1 {strides = array<i32>} : memref<16x32xf32, #tpu.memory_space<vmem>>, vector<16x2xf32>,
    %3 = vector.extract_strided_slice %0 {offsets = [0, 2], sizes = [16, 2], strides = [1, 1]} : vector<16x32xf32> to vector<16x2xf32>
    %c0_3 = arith.constant 0 : index
    %c4 = arith.constant 4 : index
    %4 = vector.load %arg2[%c0_3, %c4] : memref<16x32xf32, #tpu.memory_space<vmem>>, vector<16x2xf32>
    tpu.vector_store %arg2[%c0_3, %c4], %3 {strides = array<i32>} : memref<16x32xf32, #tpu.memory_space<vmem>>, vector<16x2xf32>,
    %5 = vector.extract_strided_slice %0 {offsets = [0, 4], sizes = [16, 2], strides = [1, 1]} : vector<16x32xf32> to vector<16x2xf32>
    %c0_4 = arith.constant 0 : index
    %c8 = arith.constant 8 : index
    %6 = vector.load %arg2[%c0_4, %c8] : memref<16x32xf32, #tpu.memory_space<vmem>>, vector<16x2xf32>
    tpu.vector_store %arg2[%c0_4, %c8], %5 {strides = array<i32>} : memref<16x32xf32, #tpu.memory_space<vmem>>, vector<16x2xf32>,
    %7 = vector.extract_strided_slice %0 {offsets = [0, 6], sizes = [16, 2], strides = [1, 1]} : vector<16x32xf32> to vector<16x2xf32>
    %c0_5 = arith.constant 0 : index
    %c12 = arith.constant 12 : index
    %8 = vector.load %arg2[%c0_5, %c12] : memref<16x32xf32, #tpu.memory_space<vmem>>, vector<16x2xf32>
    tpu.vector_store %arg2[%c0_5, %c12], %7 {strides = array<i32>} : memref<16x32xf32, #tpu.memory_space<vmem>>, vector<16x2xf32>,
    %9 = vector.extract_strided_slice %0 {offsets = [0, 8], sizes = [16, 2], strides = [1, 1]} : vector<16x32xf32> to vector<16x2xf32>
    %c0_6 = arith.constant 0 : index
    %c16 = arith.constant 16 : index
    %10 = vector.load %arg2[%c0_6, %c16] : memref<16x32xf32, #tpu.memory_space<vmem>>, vector<16x2xf32>
    tpu.vector_store %arg2[%c0_6, %c16], %9 {strides = array<i32>} : memref<16x32xf32, #tpu.memory_space<vmem>>, vector<16x2xf32>,
    %11 = vector.extract_strided_slice %0 {offsets = [0, 10], sizes = [16, 2], strides = [1, 1]} : vector<16x32xf32> to vector<16x2xf32>
    %c0_7 = arith.constant 0 : index
    %c20 = arith.constant 20 : index
    %12 = vector.load %arg2[%c0_7, %c20] : memref<16x32xf32, #tpu.memory_space<vmem>>, vector<16x2xf32>
    tpu.vector_store %arg2[%c0_7, %c20], %11 {strides = array<i32>} : memref<16x32xf32, #tpu.memory_space<vmem>>, vector<16x2xf32>,
    %13 = vector.extract_strided_slice %0 {offsets = [0, 12], sizes = [16, 2], strides = [1, 1]} : vector<16x32xf32> to vector<16x2xf32>
    %c0_8 = arith.constant 0 : index
    %c24 = arith.constant 24 : index
    %14 = vector.load %arg2[%c0_8, %c24] : memref<16x32xf32, #tpu.memory_space<vmem>>, vector<16x2xf32>
    tpu.vector_store %arg2[%c0_8, %c24], %13 {strides = array<i32>} : memref<16x32xf32, #tpu.memory_space<vmem>>, vector<16x2xf32>,
    %15 = vector.extract_strided_slice %0 {offsets = [0, 14], sizes = [16, 2], strides = [1, 1]} : vector<16x32xf32> to vector<16x2xf32>
    %c0_9 = arith.constant 0 : index
    %c28 = arith.constant 28 : index
    %16 = vector.load %arg2[%c0_9, %c28] : memref<16x32xf32, #tpu.memory_space<vmem>>, vector<16x2xf32>
    tpu.vector_store %arg2[%c0_9, %c28], %15 {strides = array<i32>} : memref<16x32xf32, #tpu.memory_space<vmem>>, vector<16x2xf32>,
    %17 = vector.extract_strided_slice %0 {offsets = [0, 16], sizes = [16, 2], strides = [1, 1]} : vector<16x32xf32> to vector<16x2xf32>
    %c0_10 = arith.constant 0 : index
    %c2 = arith.constant 2 : index
    %18 = vector.load %arg2[%c0_10, %c2] : memref<16x32xf32, #tpu.memory_space<vmem>>, vector<16x2xf32>
    tpu.vector_store %arg2[%c0_10, %c2], %17 {strides = array<i32>} : memref<16x32xf32, #tpu.memory_space<vmem>>, vector<16x2xf32>,
    %19 = vector.extract_strided_slice %0 {offsets = [0, 18], sizes = [16, 2], strides = [1, 1]} : vector<16x32xf32> to vector<16x2xf32>
    %c0_11 = arith.constant 0 : index
    %c6 = arith.constant 6 : index
    %20 = vector.load %arg2[%c0_11, %c6] : memref<16x32xf32, #tpu.memory_space<vmem>>, vector<16x2xf32>
    tpu.vector_store %arg2[%c0_11, %c6], %19 {strides = array<i32>} : memref<16x32xf32, #tpu.memory_space<vmem>>, vector<16x2xf32>,
    %21 = vector.extract_strided_slice %0 {offsets = [0, 20], sizes = [16, 2], strides = [1, 1]} : vector<16x32xf32> to vector<16x2xf32>
    %c0_12 = arith.constant 0 : index
    %c10 = arith.constant 10 : index
    %22 = vector.load %arg2[%c0_12, %c10] : memref<16x32xf32, #tpu.memory_space<vmem>>, vector<16x2xf32>
    tpu.vector_store %arg2[%c0_12, %c10], %21 {strides = array<i32>} : memref<16x32xf32, #tpu.memory_space<vmem>>, vector<16x2xf32>,
    %23 = vector.extract_strided_slice %0 {offsets = [0, 22], sizes = [16, 2], strides = [1, 1]} : vector<16x32xf32> to vector<16x2xf32>
    %c0_13 = arith.constant 0 : index
    %c14 = arith.constant 14 : index
    %24 = vector.load %arg2[%c0_13, %c14] : memref<16x32xf32, #tpu.memory_space<vmem>>, vector<16x2xf32>
    tpu.vector_store %arg2[%c0_13, %c14], %23 {strides = array<i32>} : memref<16x32xf32, #tpu.memory_space<vmem>>, vector<16x2xf32>,
    %25 = vector.extract_strided_slice %0 {offsets = [0, 24], sizes = [16, 2], strides = [1, 1]} : vector<16x32xf32> to vector<16x2xf32>
    %c0_14 = arith.constant 0 : index
    %c18 = arith.constant 18 : index
    %26 = vector.load %arg2[%c0_14, %c18] : memref<16x32xf32, #tpu.memory_space<vmem>>, vector<16x2xf32>
    tpu.vector_store %arg2[%c0_14, %c18], %25 {strides = array<i32>} : memref<16x32xf32, #tpu.memory_space<vmem>>, vector<16x2xf32>,
    %27 = vector.extract_strided_slice %0 {offsets = [0, 26], sizes = [16, 2], strides = [1, 1]} : vector<16x32xf32> to vector<16x2xf32>
    %c0_15 = arith.constant 0 : index
    %c22 = arith.constant 22 : index
    %28 = vector.load %arg2[%c0_15, %c22] : memref<16x32xf32, #tpu.memory_space<vmem>>, vector<16x2xf32>
    tpu.vector_store %arg2[%c0_15, %c22], %27 {strides = array<i32>} : memref<16x32xf32, #tpu.memory_space<vmem>>, vector<16x2xf32>,
    %29 = vector.extract_strided_slice %0 {offsets = [0, 28], sizes = [16, 2], strides = [1, 1]} : vector<16x32xf32> to vector<16x2xf32>
    %c0_16 = arith.constant 0 : index
    %c26 = arith.constant 26 : index
    %30 = vector.load %arg2[%c0_16, %c26] : memref<16x32xf32, #tpu.memory_space<vmem>>, vector<16x2xf32>
    tpu.vector_store %arg2[%c0_16, %c26], %29 {strides = array<i32>} : memref<16x32xf32, #tpu.memory_space<vmem>>, vector<16x2xf32>,
    %31 = vector.extract_strided_slice %0 {offsets = [0, 30], sizes = [16, 2], strides = [1, 1]} : vector<16x32xf32> to vector<16x2xf32>
    %c0_17 = arith.constant 0 : index
    %c30 = arith.constant 30 : index
    %32 = vector.load %arg2[%c0_17, %c30] : memref<16x32xf32, #tpu.memory_space<vmem>>, vector<16x2xf32>
    tpu.vector_store %arg2[%c0_17, %c30], %31 {strides = array<i32>} : memref<16x32xf32, #tpu.memory_space<vmem>>, vector<16x2xf32>,
    return
  }
  func.func @transform_0(%arg0: i32) -> (i32, i32) {
    %c0_i32 = arith.constant 0 : i32
    %c0_i32_0 = arith.constant 0 : i32
    return %arg0, %c0_i32 : i32, i32
  }
  func.func @transform_1(%arg0: i32) -> (i32, i32) {
    %c0_i32 = arith.constant 0 : i32
    %c0_i32_0 = arith.constant 0 : i32
    return %arg0, %c0_i32 : i32, i32
  }
}

</mosaic_0001>

<llo_original>
// kernel: tpu_custom_call.1
$region0: #{tpu_custom_call.1}
  #allocation0 [shape = 'u32[]', space=smem, size = 0x4, offset = 0x4, fixed_abs, tag = 'smem constant byte address 0x4 - core index']
  #allocation1 [shape = 'u32[144,128]{1,0:T(1,128)}', space=vmem, size = 0x12000, scoped, tag = 'internal scratch']
  %s0 = inlined_call_operand.vmem [shape: f32[64,32], index: 0, kind: input, shape index: {}]
  %s1 = inlined_call_operand.vmem [shape: f32[64,32], index: 1, kind: output, shape index: {}]
  %s2 = sld [smem:[#allocation0]]
  $region37: #{tpu_custom_call.1} parent=0
    _
  %s4 = ssub.s32 1, %s2
  %s5 = scalar_select 0, %s4, %s2
  loop: start=0, step=1, limit=6
  $region2: #{tpu_custom_call.1} parent=0 // loop_pre_header
    _
  $region3: #{tpu_custom_call.1} parent=0 // loop_header
    %s7 = sphi 0, %s11
    %p8 = scmp.ge.s32.totalorder %s7, 6
    %s17 = sphi 0, %s19
    %s20 = sphi 0, %s17
    %s21 = sphi 0, %s20
    %s37 = sphi 0, %s21
    %s43 = sphi 0, %s45
    %s46 = sphi 0, %s43
    %s47 = sphi 0, %s46
    %s63 = sphi 0, %s47
  $region4: #{tpu_custom_call.1} parent=0 // loop_header_branch
    %10 = sbr.rel (%p8) target = $region8
  $region5: #{tpu_custom_call.1} parent=0 // loop_body
    %s12 = ssub.s32 %s7, 1
    %s13 = ssub.s32 %s7, 2
    %s14 = sadd.s32 %s7, 1
    %s15 = ssub.s32 %s7, %s14
    %p16 = scmp.eq.s32.totalorder %s15, 0
    %s18 = sadd.s32 %s17, 1
    %s19 = scalar_select %p16, %s17, %s18
    %p22 = pneg %p16
    %p23 = scmp.eq.s32.totalorder %s7, 3
    %p24 = por %p22, %p23
    %p25 = scmp.ne.s32.totalorder %s17, %s20
    %p26 = scmp.eq.s32.totalorder %s7, 0
    %p27 = por %p25, %p26
    %p28 = scmp.ne.s32.totalorder %s17, %s20
    %p29 = scmp.eq.s32.totalorder %s12, 3
    %p30 = por %p28, %p29
    %p31 = scmp.ne.s32.totalorder %s20, %s21
    %p32 = scmp.eq.s32.totalorder %s12, 0
    %p33 = por %p31, %p32
    %p34 = scmp.ne.s32.totalorder %s20, %s21
    %p35 = scmp.eq.s32.totalorder %s13, 3
    %p36 = por %p34, %p35
    %p38 = scmp.ne.s32.totalorder %s21, %s37
    %p39 = scmp.eq.s32.totalorder %s13, 0
    %p40 = por %p38, %p39
    %s41 = ssub.s32 %s7, %s14
    %p42 = scmp.eq.s32.totalorder %s41, 0
    %s44 = sadd.s32 %s43, 1
    %s45 = scalar_select %p42, %s43, %s44
    %p48 = pneg %p42
    %p49 = scmp.eq.s32.totalorder %s7, 3
    %p50 = por %p48, %p49
    %p51 = scmp.ne.s32.totalorder %s43, %s46
    %p52 = scmp.eq.s32.totalorder %s7, 0
    %p53 = por %p51, %p52
    %p54 = scmp.ne.s32.totalorder %s43, %s46
    %p55 = scmp.eq.s32.totalorder %s12, 3
    %p56 = por %p54, %p55
    %p57 = scmp.ne.s32.totalorder %s46, %s47
    %p58 = scmp.eq.s32.totalorder %s12, 0
    %p59 = por %p57, %p58
    %p60 = scmp.ne.s32.totalorder %s46, %s47
    %p61 = scmp.eq.s32.totalorder %s13, 3
    %p62 = por %p60, %p61
    %p64 = scmp.ne.s32.totalorder %s47, %s63
    %p65 = scmp.eq.s32.totalorder %s13, 0
    %p66 = por %p64, %p65
    %p67 = scmp.le.s32.totalorder 1, %s7
    %p68 = scmp.lt.s32.totalorder %s7, 5
    %p69 = pnand %p67, %p68
    %p70 = pneg %p69
    // Predicated region
    $region9: #{tpu_custom_call.1} parent=5 // pred_check
      _
    $region10: #{tpu_custom_call.1} parent=5 // pred_check_branch
      %72 = sbr.rel (%p69) target = $region12
    $region11: #{tpu_custom_call.1} parent=5 // pred_region
      %s73 = ssub.s32 %s7, 1
    $region12: #{tpu_custom_call.1} parent=5 // pred_fallthru
      _
    %p74 = scmp.lt.s32.totalorder %s7, 4
    // Predicated region
    $region13: #{tpu_custom_call.1} parent=5 // pred_check
      %p75 = pneg %p74
    $region14: #{tpu_custom_call.1} parent=5 // pred_check_branch
      %77 = sbr.rel (%p75) target = $region16
    $region15: #{tpu_custom_call.1} parent=5 // pred_region
      // Predicated region
      $region17: #{tpu_custom_call.1} parent=15 // pred_check
        %p78 = pneg %p27
      $region18: #{tpu_custom_call.1} parent=15 // pred_check_branch
        %80 = sbr.rel (%p78) target = $region20
      $region19: #{tpu_custom_call.1} parent=15 // pred_region
        %s81 = smul.u32 2, %s7
        %p82 = scmp.lt.s32.totalorder %s81, 7
        %s83 = scalar_select %p82, %s81, 7
        %s84 = smul.addr %s83, 8
        %s85 = scalar_lea.vmem %s0, %s84
        %s86 = smul.u32 2, %s7
      $region20: #{tpu_custom_call.1} parent=15 // pred_fallthru
        _
    $region16: #{tpu_custom_call.1} parent=5 // pred_fallthru
      _
    %p87 = scmp.le.s32.totalorder 1, %s7
    %p88 = scmp.lt.s32.totalorder %s7, 5
    %p89 = pnand %p87, %p88
    %p90 = pneg %p89
    // Predicated region
    $region21: #{tpu_custom_call.1} parent=5 // pred_check
      _
    $region22: #{tpu_custom_call.1} parent=5 // pred_check_branch
      %92 = sbr.rel (%p89) target = $region24
    $region23: #{tpu_custom_call.1} parent=5 // pred_region
      %s93 = ssub.s32 %s7, 1
      %s94 = smul.u32 2, %s12
      %p95 = scmp.lt.s32.totalorder %s94, 7
      %s96 = scalar_select %p95, %s94, 7
      %s97 = smul.addr %s96, 8
      %s98 = scalar_lea.vmem %s0, %s97
      %p99 = pneg %p33
      %p100 = pneg %p30
      %p101 = pneg %p59
      %p102 = pneg %p56
      %s103 = smul.u32 2, %s12
      %p104 = scmp.lt.s32.totalorder %s103, 7
      %s105 = scalar_select %p104, %s103, 7
      %s106 = smul.addr %s105, 8
      %s107 = scalar_lea.vmem %s1, %s106
      %s108 = smul.u32 2, %s12
      %p109 = scmp.lt.s32.totalorder %s108, 7
      %s110 = scalar_select %p109, %s108, 7
      %s111 = smul.addr %s110, 8
      %s112 = scalar_lea.vmem %s0, %s111
      %s113 = smul.u32 2, %s12
      %s114 = smul.u32 2, %s12
      %p115 = scmp.lt.s32.totalorder %s114, 7
      %s116 = scalar_select %p115, %s114, 7
      %s117 = smul.addr %s116, 8
      %s118 = scalar_lea.vmem %s1, %s117
      %s119 = smul.u32 2, %s12
      %v120 = vld [vmem:[%s112] sm:$0xff]
      %v121 = vld [vmem:[%s112 + $0x8] sm:$0xff]
      %vm122 = vcmask 15360
      %123 = vst.msk [vmem:[%s118] sm:$0xff] %vm122, %v120
      %124 = vst.msk [vmem:[%s118 + $0x8] sm:$0xff] %vm122, %v121
      %127 = vrot.lane.b32.xlu0 %v120, 2
      %v128 = vpop.permute.xlu0 %127
      %129 = vrot.lane.b32.xlu0 %v121, 2
      %v130 = vpop.permute.xlu0 %129
      %vm133 = vcmask 48160
      %134 = vst.msk [vmem:[%s118] sm:$0xff] %vm133, %v128
      %135 = vst.msk [vmem:[%s118 + $0x8] sm:$0xff] %vm133, %v130
      %136 = vrot.lane.b32.xlu0 %v120, 4
      %v137 = vpop.permute.xlu0 %136
      %138 = vrot.lane.b32.xlu0 %v121, 4
      %v139 = vpop.permute.xlu0 %138
      %vm142 = vcmask 80960
      %143 = vst.msk [vmem:[%s118] sm:$0xff] %vm142, %v137
      %144 = vst.msk [vmem:[%s118 + $0x8] sm:$0xff] %vm142, %v139
      %145 = vrot.lane.b32.xlu0 %v120, 6
      %v146 = vpop.permute.xlu0 %145
      %147 = vrot.lane.b32.xlu0 %v121, 6
      %v148 = vpop.permute.xlu0 %147
      %vm151 = vcmask 113760
      %152 = vst.msk [vmem:[%s118] sm:$0xff] %vm151, %v146
      %153 = vst.msk [vmem:[%s118 + $0x8] sm:$0xff] %vm151, %v148
      %154 = vrot.lane.b32.xlu0 %v120, 8
      %v155 = vpop.permute.xlu0 %154
      %156 = vrot.lane.b32.xlu0 %v121, 8
      %v157 = vpop.permute.xlu0 %156
      %vm160 = vcmask 146560
      %161 = vst.msk [vmem:[%s118] sm:$0xff] %vm160, %v155
      %162 = vst.msk [vmem:[%s118 + $0x8] sm:$0xff] %vm160, %v157
      %163 = vrot.lane.b32.xlu0 %v120, 10
      %v164 = vpop.permute.xlu0 %163
      %165 = vrot.lane.b32.xlu0 %v121, 10
      %v166 = vpop.permute.xlu0 %165
      %vm169 = vcmask 179360
      %170 = vst.msk [vmem:[%s118] sm:$0xff] %vm169, %v164
      %171 = vst.msk [vmem:[%s118 + $0x8] sm:$0xff] %vm169, %v166
      %172 = vrot.lane.b32.xlu0 %v120, 12
      %v173 = vpop.permute.xlu0 %172
      %174 = vrot.lane.b32.xlu0 %v121, 12
      %v175 = vpop.permute.xlu0 %174
      %vm178 = vcmask 212160
      %179 = vst.msk [vmem:[%s118] sm:$0xff] %vm178, %v173
      %180 = vst.msk [vmem:[%s118 + $0x8] sm:$0xff] %vm178, %v175
      %181 = vrot.lane.b32.xlu0 %v120, 14
      %v182 = vpop.permute.xlu0 %181
      %183 = vrot.lane.b32.xlu0 %v121, 14
      %v184 = vpop.permute.xlu0 %183
      %vm187 = vcmask 244960
      %188 = vst.msk [vmem:[%s118] sm:$0xff] %vm187, %v182
      %189 = vst.msk [vmem:[%s118 + $0x8] sm:$0xff] %vm187, %v184
      %190 = vrot.lane.b32.xlu0 %v120, 114
      %v191 = vpop.permute.xlu0 %190
      %192 = vrot.lane.b32.xlu0 %v121, 114
      %v193 = vpop.permute.xlu0 %192
      %vm196 = vcmask 31760
      %197 = vst.msk [vmem:[%s118] sm:$0xff] %vm196, %v191
      %198 = vst.msk [vmem:[%s118 + $0x8] sm:$0xff] %vm196, %v193
      %199 = vrot.lane.b32.xlu0 %v120, 116
      %v200 = vpop.permute.xlu0 %199
      %201 = vrot.lane.b32.xlu0 %v121, 116
      %v202 = vpop.permute.xlu0 %201
      %vm205 = vcmask 64560
      %206 = vst.msk [vmem:[%s118] sm:$0xff] %vm205, %v200
      %207 = vst.msk [vmem:[%s118 + $0x8] sm:$0xff] %vm205, %v202
      %208 = vrot.lane.b32.xlu0 %v120, 118
      %v209 = vpop.permute.xlu0 %208
      %210 = vrot.lane.b32.xlu0 %v121, 118
      %v211 = vpop.permute.xlu0 %210
      %vm214 = vcmask 97360
      %215 = vst.msk [vmem:[%s118] sm:$0xff] %vm214, %v209
      %216 = vst.msk [vmem:[%s118 + $0x8] sm:$0xff] %vm214, %v211
      %217 = vrot.lane.b32.xlu0 %v120, 120
      %v218 = vpop.permute.xlu0 %217
      %219 = vrot.lane.b32.xlu0 %v121, 120
      %v220 = vpop.permute.xlu0 %219
      %vm223 = vcmask 130160
      %224 = vst.msk [vmem:[%s118] sm:$0xff] %vm223, %v218
      %225 = vst.msk [vmem:[%s118 + $0x8] sm:$0xff] %vm223, %v220
      %226 = vrot.lane.b32.xlu0 %v120, 122
      %v227 = vpop.permute.xlu0 %226
      %228 = vrot.lane.b32.xlu0 %v121, 122
      %v229 = vpop.permute.xlu0 %228
      %vm232 = vcmask 162960
      %233 = vst.msk [vmem:[%s118] sm:$0xff] %vm232, %v227
      %234 = vst.msk [vmem:[%s118 + $0x8] sm:$0xff] %vm232, %v229
      %235 = vrot.lane.b32.xlu0 %v120, 124
      %v236 = vpop.permute.xlu0 %235
      %237 = vrot.lane.b32.xlu0 %v121, 124
      %v238 = vpop.permute.xlu0 %237
      %vm241 = vcmask 195760
      %242 = vst.msk [vmem:[%s118] sm:$0xff] %vm241, %v236
      %243 = vst.msk [vmem:[%s118 + $0x8] sm:$0xff] %vm241, %v238
      %244 = vrot.lane.b32.xlu0 %v120, 126
      %v245 = vpop.permute.xlu0 %244
      %246 = vrot.lane.b32.xlu0 %v121, 126
      %v247 = vpop.permute.xlu0 %246
      %vm250 = vcmask 228560
      %251 = vst.msk [vmem:[%s118] sm:$0xff] %vm250, %v245
      %252 = vst.msk [vmem:[%s118 + $0x8] sm:$0xff] %vm250, %v247
      %vm253 = vcmask 261360
      %254 = vst.msk [vmem:[%s118] sm:$0xff] %vm253, %v120
      %255 = vst.msk [vmem:[%s118 + $0x8] sm:$0xff] %vm253, %v121
      %s256 = smul.u32 2, %s12
      %p257 = scmp.lt.s32.totalorder %s256, 7
      %s258 = scalar_select %p257, %s256, 7
      %s259 = smul.addr %s258, 8
      %s260 = scalar_lea.vmem %s1, %s259
      // Predicated region
      $region25: #{tpu_custom_call.1} parent=23 // pred_check
        %p261 = pneg %p56
      $region26: #{tpu_custom_call.1} parent=23 // pred_check_branch
        %263 = sbr.rel (%p261) target = $region28
      $region27: #{tpu_custom_call.1} parent=23 // pred_region
        %s264 = smul.u32 2, %s12
      $region28: #{tpu_custom_call.1} parent=23 // pred_fallthru
        _
    $region24: #{tpu_custom_call.1} parent=5 // pred_fallthru
      _
    %p265 = scmp.le.s32.totalorder 2, %s7
    // Predicated region
    $region29: #{tpu_custom_call.1} parent=5 // pred_check
      %p266 = pneg %p265
    $region30: #{tpu_custom_call.1} parent=5 // pred_check_branch
      %268 = sbr.rel (%p266) target = $region32
    $region31: #{tpu_custom_call.1} parent=5 // pred_region
      %s269 = ssub.s32 %s7, 2
      // Predicated region
      $region33: #{tpu_custom_call.1} parent=31 // pred_check
        %p270 = pneg %p62
      $region34: #{tpu_custom_call.1} parent=31 // pred_check_branch
        %272 = sbr.rel (%p270) target = $region36
      $region35: #{tpu_custom_call.1} parent=31 // pred_region
        %s273 = smul.u32 2, %s13
        %p274 = scmp.lt.s32.totalorder %s273, 7
        %s275 = scalar_select %p274, %s273, 7
        %s276 = smul.addr %s275, 8
        %s277 = scalar_lea.vmem %s1, %s276
      $region36: #{tpu_custom_call.1} parent=31 // pred_fallthru
        _
    $region32: #{tpu_custom_call.1} parent=5 // pred_fallthru
      _
  $region6: #{tpu_custom_call.1} parent=0 // loop_footer
    %s11 = sadd.s32 1, %s7
  $region7: #{tpu_custom_call.1} parent=0 // loop_footer_branch
    %6 = sbr.rel target = $region3
  $region8: #{tpu_custom_call.1} parent=0 // loop_exit
    _

</llo_original>
